<compile_context>
chip_gen: v5e
topology: v5e:2x2
jax: 0.10.0
libtpu: 0.0.40
codegen_flags: <defaults>
</compile_context>

<pallas_src>
import math

import jax
import jax.numpy as jnp
from jax.experimental import pallas as pl
from jax.experimental.pallas import tpu as pltpu

LANES = 128   # TPU vreg lane width
BP = 8        # sublane tile height (padded batch for the recurrence)


# ----------------------------- fused Pallas kernel --------------------------

def _make_fused_kernel(B, T, NG, Hr, offs):
    """Builds the fused kernel for static (batch, timesteps, neuron-groups)."""
    TB = T * B
    ROWS_X = NG * TB
    OFF_W2, OFF_W3, OFF_WIH, OFF_WHH, OFF_WFC = offs

    def kernel(data_ref, p_ref, out_ref, gx_ref):
        # ---- lane-packed deep-set MLP (4 neuron slots along the 128 lanes) --
        x = data_ref[0:ROWS_X, :]                                     # (NG*T*B, 128)
        h = jnp.maximum(x * p_ref[0:1, :] + p_ref[1:2, :], 0.0)       # Linear(1,Hd) as outer prod
        h = jnp.maximum(
            jnp.dot(h, p_ref[OFF_W2:OFF_W2 + LANES, :],
                    preferred_element_type=jnp.float32) + p_ref[2:3, :], 0.0)
        h = jnp.maximum(
            jnp.dot(h, p_ref[OFF_W3:OFF_W3 + LANES, :],
                    preferred_element_type=jnp.float32) + p_ref[3:4, :], 0.0)

        # ---- neuron sum: tree-reduce the NG sublane slabs (lane slots are ----
        # ---- folded into the vertically-stacked W_ih matmul below)       ----
        slabs = [h[q * TB:(q + 1) * TB, :] for q in range(NG)]
        while len(slabs) > 1:
            nxt = [slabs[i] + slabs[i + 1] for i in range(0, len(slabs) - 1, 2)]
            if len(slabs) % 2:
                nxt.append(slabs[-1])
            slabs = nxt
        pooled = slabs[0]                                              # (T*B, 128)

        # ---- hoisted LSTM input projection (+ lane-slot fold), then scale ---
        graw = jnp.dot(pooled, p_ref[OFF_WIH:OFF_WIH + LANES, :],
                       preferred_element_type=jnp.float32)             # (T*B, 4*Hr)
        invc = data_ref[ROWS_X:ROWS_X + TB, :]                         # 1/neuron_counts, lane-dense
        scaled = graw * invc + p_ref[4:5, :]                           # scale BEFORE bias

        # ---- pad the batch dim to a full 8-row sublane tile per timestep ----
        gx_ref[...] = jnp.zeros_like(gx_ref)
        for t in range(T):
            gx_ref[t * BP:t * BP + B, :] = scaled[t * B:(t + 1) * B, :]

        # ---- fully-unrolled LSTM recurrence (static T=8) ---------------------
        whh = p_ref[OFF_WHH:OFF_WHH + Hr, :]                           # (Hr, 4*Hr), hoisted
        h_t = jnp.zeros((BP, Hr), jnp.float32)
        c_t = jnp.zeros((BP, Hr), jnp.float32)
        for t in range(T):
            gates = gx_ref[t * BP:(t + 1) * BP, :] + jnp.dot(
                h_t, whh, preferred_element_type=jnp.float32)          # (8, 4*Hr)
            s = jax.nn.sigmoid(gates)                                  # one wide EUP pass: i,f,(g),o
            g = jnp.tanh(gates[:, 2 * Hr:3 * Hr])
            c_t = s[:, Hr:2 * Hr] * c_t + s[:, 0:Hr] * g
            h_t = s[:, 3 * Hr:4 * Hr] * jnp.tanh(c_t)

        # ---- classifier on the last hidden state (lane-padded to 128) -------
        out_ref[...] = (jnp.dot(h_t, p_ref[OFF_WFC:OFF_WFC + Hr, :],
                                preferred_element_type=jnp.float32) + p_ref[5:6, :])

    return kernel


# ----------------------------- model wrapper --------------------------------

def init_params(key, hidden_dim, rnn_hidden_dim, num_classes, num_linear_layers=3):
    ks = jax.random.split(key, num_linear_layers + 2)

    def linear_init(k, out_f, in_f):
        bound = 1.0 / math.sqrt(in_f)
        kw, kb = jax.random.split(k)
        w = jax.random.uniform(kw, (out_f, in_f), jnp.float32, -bound, bound)
        b = jax.random.uniform(kb, (out_f,), jnp.float32, -bound, bound)
        return w, b

    transform = []
    in_f = 1
    for i in range(num_linear_layers):
        transform.append(linear_init(ks[i], hidden_dim, in_f))
        in_f = hidden_dim

    bound = 1.0 / math.sqrt(rnn_hidden_dim)
    k1, k2, k3, k4 = jax.random.split(ks[num_linear_layers], 4)
    w_ih = jax.random.uniform(k1, (4 * rnn_hidden_dim, hidden_dim), jnp.float32, -bound, bound)
    w_hh = jax.random.uniform(k2, (4 * rnn_hidden_dim, rnn_hidden_dim), jnp.float32, -bound, bound)
    b_ih = jax.random.uniform(k3, (4 * rnn_hidden_dim,), jnp.float32, -bound, bound)
    b_hh = jax.random.uniform(k4, (4 * rnn_hidden_dim,), jnp.float32, -bound, bound)

    fc_w, fc_b = linear_init(ks[num_linear_layers + 1], num_classes, rnn_hidden_dim)

    return {"transform": transform, "w_ih": w_ih, "w_hh": w_hh,
            "b_ih": b_ih, "b_hh": b_hh, "fc_w": fc_w, "fc_b": fc_b}


def _row(v):
    """Pad a 1-D parameter vector to a lane-dense (1, 128) row."""
    v = v.reshape(-1)
    return jnp.pad(v, (0, LANES - v.shape[0])).reshape(1, LANES)


@jax.jit
def deepset_rnn_forward(params, x, neuron_counts):
    """x: (B, T, N) float32, neuron_counts: (B,) -> logits (B, num_classes)."""
    B, T, N = x.shape
    (w1, b1), (w2, b2), (w3, b3) = params["transform"]     # num_linear_layers == 3
    Hd = w1.shape[0]
    Hr = params["w_hh"].shape[1]
    C = params["fc_w"].shape[0]

    assert LANES % Hd == 0, "hidden_dim must divide 128 for lane packing"
    LP = LANES // Hd                                        # neuron slots per row (4)
    assert N % LP == 0, "num_neurons must be a multiple of 128/hidden_dim"
    assert 4 * Hr == LANES, "packed layout assumes 4*rnn_hidden_dim == 128"
    assert B <= BP and C <= LANES
    NG = N // LP
    TB = T * B

    # ---- parameter slab: one (456, 128) f32 DMA instead of 13 tiny ones -----
    eye_lp = jnp.eye(LP, dtype=jnp.float32)
    vec_rows = jnp.concatenate([
        _row(jnp.tile(w1[:, 0], LP)),                       # row 0: Linear(1,Hd) weight, lane-tiled
        _row(jnp.tile(b1, LP)),                             # row 1
        _row(jnp.tile(b2, LP)),                             # row 2
        _row(jnp.tile(b3, LP)),                             # row 3
        _row(params["b_ih"] + params["b_hh"]),              # row 4: folded LSTM bias
        _row(params["fc_b"]),                               # row 5: classifier bias (lane-padded)
        jnp.zeros((2, LANES), jnp.float32),                 # rows 6-7: pad to sublane tile
    ], axis=0)
    w2_blk = jnp.kron(eye_lp, w2.T)                         # block-diag (128, 128)
    w3_blk = jnp.kron(eye_lp, w3.T)
    wih_stk = jnp.tile(params["w_ih"].T, (LP, 1))           # (128, 4*Hr): lane-slot sum folded in
    whh_t = params["w_hh"].T                                # (Hr, 4*Hr)
    wfc_pad = jnp.pad(params["fc_w"].T, ((0, 0), (0, LANES - C)))   # (Hr, 128)

    params_slab = jnp.concatenate([vec_rows, w2_blk, w3_blk, wih_stk, whh_t, wfc_pad], axis=0)
    off_w2 = vec_rows.shape[0]
    off_w3 = off_w2 + LANES
    off_wih = off_w3 + LANES
    off_whh = off_wih + LANES
    off_wfc = off_whh + Hr

    # ---- data slab: lane-packed x + lane-dense 1/neuron_counts --------------
    # row r = (q*T + t)*B + b, lane p*Hd + j holds x[b, t, q*LP + p] (repeated over j)
    xg = jnp.transpose(x, (2, 1, 0)).reshape(NG, LP, T, B)
    xg = jnp.transpose(xg, (0, 2, 3, 1)).reshape(NG * TB, LP)
    x_rep = jnp.repeat(xg, Hd, axis=1)                      # (NG*T*B, 128)
    invc = jnp.tile(1.0 / neuron_counts.astype(jnp.float32), (T,)).reshape(TB, 1)
    invc = jnp.broadcast_to(invc, (TB, LANES))
    data_slab = jnp.concatenate([x_rep, invc], axis=0)      # (NG*T*B + T*B, 128)

    out = pl.pallas_call(
        _make_fused_kernel(B, T, NG, Hr, (off_w2, off_w3, off_wih, off_whh, off_wfc)),
        out_shape=jax.ShapeDtypeStruct((BP, LANES), jnp.float32),
        scratch_shapes=[pltpu.VMEM((T * BP, 4 * Hr), jnp.float32)],    # batch-padded gates_x
        # Footprint is <1 MiB; if B/T/N scale this slab past ~24-32 MiB,
        # introduce a grid over the neuron-slab axis instead of raising this.
        compiler_params=pltpu.CompilerParams(vmem_limit_bytes=32 * 1024 * 1024),
    )(data_slab, params_slab)
    return out[:B, :C]


# ------------------------------ pure-JAX reference ---------------------------

def reference_forward(params, x, neuron_counts):
    B, T, N = x.shape
    Hr = params["w_hh"].shape[1]

    # Mirror the PyTorch reshapes exactly (Dropout = identity in eval mode).
    h = jnp.transpose(x, (0, 2, 1)).reshape(B * N, T)[:, :, None]   # (B*N, T, 1)
    for w, b in params["transform"]:
        h = jnp.maximum(h @ w.T + b, 0.0)
    h = h.reshape(B, N, T, -1).transpose(0, 2, 1, 3)                # (B, T, N, Hd)
    xs = jnp.sum(h, axis=2) / neuron_counts.astype(jnp.float32)[:, None, None]

    w_ih_t, w_hh_t = params["w_ih"].T, params["w_hh"].T
    b = params["b_ih"] + params["b_hh"]

    def step(carry, x_t):
        h_, c_ = carry
        gates = x_t @ w_ih_t + h_ @ w_hh_t + b
        i = jax.nn.sigmoid(gates[:, 0 * Hr:1 * Hr])
        f = jax.nn.sigmoid(gates[:, 1 * Hr:2 * Hr])
        g = jnp.tanh(gates[:, 2 * Hr:3 * Hr])
        o = jax.nn.sigmoid(gates[:, 3 * Hr:4 * Hr])
        c_new = f * c_ + i * g
        h_new = o * jnp.tanh(c_new)
        return (h_new, c_new), None

    init = (jnp.zeros((B, Hr), jnp.float32), jnp.zeros((B, Hr), jnp.float32))
    (h_last, _), _ = jax.lax.scan(step, init, jnp.transpose(xs, (1, 0, 2)))
    return h_last @ params["fc_w"].T + params["fc_b"]


# ---------------------------------- main -------------------------------------

if __name__ == "__main__":
    HIDDEN_DIM = 32        # deep-set transform width
    RNN_HIDDEN_DIM = 32    # LSTM hidden size
    NUM_CLASSES = 10
    B, T, N = 2, 8, 16     # batch, timesteps, neurons  (B,T > 1 so .squeeze() is a no-op)

    key = jax.random.PRNGKey(0)
    k_params, k_x = jax.random.split(key)

    params = init_params(k_params, HIDDEN_DIM, RNN_HIDDEN_DIM, NUM_CLASSES)
    x = jax.random.normal(k_x, (B, T, N), jnp.float32)
    neuron_counts = jnp.array([16.0, 12.0], jnp.float32)

    out = deepset_rnn_forward(params, x, neuron_counts)
    out = jax.block_until_ready(out)

    ref = reference_forward(params, x, neuron_counts)
    assert out.shape == (B, NUM_CLASSES)
    assert jnp.allclose(out, ref, atol=1e-4, rtol=1e-4), "mismatch vs pure-JAX reference"

    print("KERNEL_OK")
</pallas_src>

<mosaic_0001>
module attributes {stable_mosaic.version = 11 : i64} {
  func.func @kernel(%arg0: memref<80x128xf32, #tpu.memory_space<vmem>>, %arg1: memref<456x128xf32, #tpu.memory_space<vmem>>, %arg2: memref<8x128xf32, #tpu.memory_space<vmem>>, %arg3: memref<64x128xf32, #tpu.memory_space<vmem>>) attributes {dimension_semantics = [], scalar_prefetch = 0 : i64, scratch_operands = 1 : i64, tpu.core_type = #tpu.core_type<tc>} {
    %c0 = arith.constant 0 : index
    %c0_0 = arith.constant 0 : index
    %0 = vector.load %arg0[%c0, %c0_0] : memref<80x128xf32, #tpu.memory_space<vmem>>, vector<64x128xf32>
    %c0_1 = arith.constant 0 : index
    %c0_2 = arith.constant 0 : index
    %1 = vector.load %arg1[%c0_1, %c0_2] : memref<456x128xf32, #tpu.memory_space<vmem>>, vector<1x128xf32>
    %2 = vector.broadcast %1 : vector<1x128xf32> to vector<64x128xf32>
    %3 = arith.mulf %0, %2 : vector<64x128xf32>
    %c1 = arith.constant 1 : index
    %c0_3 = arith.constant 0 : index
    %4 = vector.load %arg1[%c1, %c0_3] : memref<456x128xf32, #tpu.memory_space<vmem>>, vector<1x128xf32>
    %5 = vector.broadcast %4 : vector<1x128xf32> to vector<64x128xf32>
    %6 = arith.addf %3, %5 : vector<64x128xf32>
    %cst = arith.constant 0.000000e+00 : f32
    %7 = vector.broadcast %cst : f32 to vector<64x128xf32>
    %8 = arith.maximumf %6, %7 : vector<64x128xf32>
    %c8 = arith.constant 8 : index
    %c0_4 = arith.constant 0 : index
    %9 = vector.load %arg1[%c8, %c0_4] : memref<456x128xf32, #tpu.memory_space<vmem>>, vector<128x128xf32>
    %cst_5 = arith.constant dense<0.000000e+00> : vector<64x128xf32>
    %10 = tpu.matmul %8, %9, %cst_5 {dimension_numbers = #tpu.dot_dimension_numbers<[1], [0], [0], [1], [0, 0, 1, 1], [], []>} : vector<64x128xf32>, vector<128x128xf32>, vector<64x128xf32> -> vector<64x128xf32>
    %c2 = arith.constant 2 : index
    %c0_6 = arith.constant 0 : index
    %11 = vector.load %arg1[%c2, %c0_6] : memref<456x128xf32, #tpu.memory_space<vmem>>, vector<1x128xf32>
    %12 = vector.broadcast %11 : vector<1x128xf32> to vector<64x128xf32>
    %13 = arith.addf %10, %12 : vector<64x128xf32>
    %cst_7 = arith.constant 0.000000e+00 : f32
    %14 = vector.broadcast %cst_7 : f32 to vector<64x128xf32>
    %15 = arith.maximumf %13, %14 : vector<64x128xf32>
    %c136 = arith.constant 136 : index
    %c0_8 = arith.constant 0 : index
    %16 = vector.load %arg1[%c136, %c0_8] : memref<456x128xf32, #tpu.memory_space<vmem>>, vector<128x128xf32>
    %cst_9 = arith.constant dense<0.000000e+00> : vector<64x128xf32>
    %17 = tpu.matmul %15, %16, %cst_9 {dimension_numbers = #tpu.dot_dimension_numbers<[1], [0], [0], [1], [0, 0, 1, 1], [], []>} : vector<64x128xf32>, vector<128x128xf32>, vector<64x128xf32> -> vector<64x128xf32>
    %c3 = arith.constant 3 : index
    %c0_10 = arith.constant 0 : index
    %18 = vector.load %arg1[%c3, %c0_10] : memref<456x128xf32, #tpu.memory_space<vmem>>, vector<1x128xf32>
    %19 = vector.broadcast %18 : vector<1x128xf32> to vector<64x128xf32>
    %20 = arith.addf %17, %19 : vector<64x128xf32>
    %cst_11 = arith.constant 0.000000e+00 : f32
    %21 = vector.broadcast %cst_11 : f32 to vector<64x128xf32>
    %22 = arith.maximumf %20, %21 : vector<64x128xf32>
    %23 = vector.extract_strided_slice %22 {offsets = [0, 0], sizes = [16, 128], strides = [1, 1]} : vector<64x128xf32> to vector<16x128xf32>
    %24 = vector.extract_strided_slice %22 {offsets = [16, 0], sizes = [16, 128], strides = [1, 1]} : vector<64x128xf32> to vector<16x128xf32>
    %25 = vector.extract_strided_slice %22 {offsets = [32, 0], sizes = [16, 128], strides = [1, 1]} : vector<64x128xf32> to vector<16x128xf32>
    %26 = vector.extract_strided_slice %22 {offsets = [48, 0], sizes = [16, 128], strides = [1, 1]} : vector<64x128xf32> to vector<16x128xf32>
    %27 = arith.addf %23, %24 : vector<16x128xf32>
    %28 = arith.addf %25, %26 : vector<16x128xf32>
    %29 = arith.addf %27, %28 : vector<16x128xf32>
    %c264 = arith.constant 264 : index
    %c0_12 = arith.constant 0 : index
    %30 = vector.load %arg1[%c264, %c0_12] : memref<456x128xf32, #tpu.memory_space<vmem>>, vector<128x128xf32>
    %cst_13 = arith.constant dense<0.000000e+00> : vector<16x128xf32>
    %31 = tpu.matmul %29, %30, %cst_13 {dimension_numbers = #tpu.dot_dimension_numbers<[1], [0], [0], [1], [0, 0, 1, 1], [], []>} : vector<16x128xf32>, vector<128x128xf32>, vector<16x128xf32> -> vector<16x128xf32>
    %c64 = arith.constant 64 : index
    %c0_14 = arith.constant 0 : index
    %32 = vector.load %arg0[%c64, %c0_14] : memref<80x128xf32, #tpu.memory_space<vmem>>, vector<16x128xf32>
    %33 = arith.mulf %31, %32 : vector<16x128xf32>
    %c4 = arith.constant 4 : index
    %c0_15 = arith.constant 0 : index
    %34 = vector.load %arg1[%c4, %c0_15] : memref<456x128xf32, #tpu.memory_space<vmem>>, vector<1x128xf32>
    %35 = vector.broadcast %34 : vector<1x128xf32> to vector<16x128xf32>
    %36 = arith.addf %33, %35 : vector<16x128xf32>
    %cst_16 = arith.constant 0.000000e+00 : f32
    %37 = vector.broadcast %cst_16 : f32 to vector<64x128xf32>
    %c0_17 = arith.constant 0 : index
    %c0_18 = arith.constant 0 : index
    %38 = vector.load %arg3[%c0_17, %c0_18] : memref<64x128xf32, #tpu.memory_space<vmem>>, vector<64x128xf32>
    tpu.vector_store %arg3[%c0_17, %c0_18], %37 {strides = array<i32>} : memref<64x128xf32, #tpu.memory_space<vmem>>, vector<64x128xf32>,
    %39 = vector.extract_strided_slice %36 {offsets = [0, 0], sizes = [2, 128], strides = [1, 1]} : vector<16x128xf32> to vector<2x128xf32>
    %c0_19 = arith.constant 0 : index
    %c0_20 = arith.constant 0 : index
    %40 = vector.load %arg3[%c0_19, %c0_20] : memref<64x128xf32, #tpu.memory_space<vmem>>, vector<2x128xf32>
    tpu.vector_store %arg3[%c0_19, %c0_20], %39 {strides = array<i32>} : memref<64x128xf32, #tpu.memory_space<vmem>>, vector<2x128xf32>,
    %41 = vector.extract_strided_slice %36 {offsets = [2, 0], sizes = [2, 128], strides = [1, 1]} : vector<16x128xf32> to vector<2x128xf32>
    %c8_21 = arith.constant 8 : index
    %c0_22 = arith.constant 0 : index
    %42 = vector.load %arg3[%c8_21, %c0_22] : memref<64x128xf32, #tpu.memory_space<vmem>>, vector<2x128xf32>
    tpu.vector_store %arg3[%c8_21, %c0_22], %41 {strides = array<i32>} : memref<64x128xf32, #tpu.memory_space<vmem>>, vector<2x128xf32>,
    %43 = vector.extract_strided_slice %36 {offsets = [4, 0], sizes = [2, 128], strides = [1, 1]} : vector<16x128xf32> to vector<2x128xf32>
    %c16 = arith.constant 16 : index
    %c0_23 = arith.constant 0 : index
    %44 = vector.load %arg3[%c16, %c0_23] : memref<64x128xf32, #tpu.memory_space<vmem>>, vector<2x128xf32>
    tpu.vector_store %arg3[%c16, %c0_23], %43 {strides = array<i32>} : memref<64x128xf32, #tpu.memory_space<vmem>>, vector<2x128xf32>,
    %45 = vector.extract_strided_slice %36 {offsets = [6, 0], sizes = [2, 128], strides = [1, 1]} : vector<16x128xf32> to vector<2x128xf32>
    %c24 = arith.constant 24 : index
    %c0_24 = arith.constant 0 : index
    %46 = vector.load %arg3[%c24, %c0_24] : memref<64x128xf32, #tpu.memory_space<vmem>>, vector<2x128xf32>
    tpu.vector_store %arg3[%c24, %c0_24], %45 {strides = array<i32>} : memref<64x128xf32, #tpu.memory_space<vmem>>, vector<2x128xf32>,
    %47 = vector.extract_strided_slice %36 {offsets = [8, 0], sizes = [2, 128], strides = [1, 1]} : vector<16x128xf32> to vector<2x128xf32>
    %c32 = arith.constant 32 : index
    %c0_25 = arith.constant 0 : index
    %48 = vector.load %arg3[%c32, %c0_25] : memref<64x128xf32, #tpu.memory_space<vmem>>, vector<2x128xf32>
    tpu.vector_store %arg3[%c32, %c0_25], %47 {strides = array<i32>} : memref<64x128xf32, #tpu.memory_space<vmem>>, vector<2x128xf32>,
    %49 = vector.extract_strided_slice %36 {offsets = [10, 0], sizes = [2, 128], strides = [1, 1]} : vector<16x128xf32> to vector<2x128xf32>
    %c40 = arith.constant 40 : index
    %c0_26 = arith.constant 0 : index
    %50 = vector.load %arg3[%c40, %c0_26] : memref<64x128xf32, #tpu.memory_space<vmem>>, vector<2x128xf32>
    tpu.vector_store %arg3[%c40, %c0_26], %49 {strides = array<i32>} : memref<64x128xf32, #tpu.memory_space<vmem>>, vector<2x128xf32>,
    %51 = vector.extract_strided_slice %36 {offsets = [12, 0], sizes = [2, 128], strides = [1, 1]} : vector<16x128xf32> to vector<2x128xf32>
    %c48 = arith.constant 48 : index
    %c0_27 = arith.constant 0 : index
    %52 = vector.load %arg3[%c48, %c0_27] : memref<64x128xf32, #tpu.memory_space<vmem>>, vector<2x128xf32>
    tpu.vector_store %arg3[%c48, %c0_27], %51 {strides = array<i32>} : memref<64x128xf32, #tpu.memory_space<vmem>>, vector<2x128xf32>,
    %53 = vector.extract_strided_slice %36 {offsets = [14, 0], sizes = [2, 128], strides = [1, 1]} : vector<16x128xf32> to vector<2x128xf32>
    %c56 = arith.constant 56 : index
    %c0_28 = arith.constant 0 : index
    %54 = vector.load %arg3[%c56, %c0_28] : memref<64x128xf32, #tpu.memory_space<vmem>>, vector<2x128xf32>
    tpu.vector_store %arg3[%c56, %c0_28], %53 {strides = array<i32>} : memref<64x128xf32, #tpu.memory_space<vmem>>, vector<2x128xf32>,
    %c392 = arith.constant 392 : index
    %c0_29 = arith.constant 0 : index
    %55 = vector.load %arg1[%c392, %c0_29] : memref<456x128xf32, #tpu.memory_space<vmem>>, vector<32x128xf32>
    %cst_30 = arith.constant 0.000000e+00 : f32
    %56 = vector.broadcast %cst_30 : f32 to vector<8x32xf32>
    %cst_31 = arith.constant 0.000000e+00 : f32
    %57 = vector.broadcast %cst_31 : f32 to vector<8x32xf32>
    %c0_32 = arith.constant 0 : index
    %c0_33 = arith.constant 0 : index
    %58 = vector.load %arg3[%c0_32, %c0_33] : memref<64x128xf32, #tpu.memory_space<vmem>>, vector<8x128xf32>
    %cst_34 = arith.constant dense<0.000000e+00> : vector<8x128xf32>
    %59 = tpu.matmul %56, %55, %cst_34 {dimension_numbers = #tpu.dot_dimension_numbers<[1], [0], [0], [1], [0, 0, 1, 1], [], []>} : vector<8x32xf32>, vector<32x128xf32>, vector<8x128xf32> -> vector<8x128xf32>
    %60 = arith.addf %58, %59 : vector<8x128xf32>
    %61 = arith.negf %60 : vector<8x128xf32>
    %62 = math.exp %61 : vector<8x128xf32>
    %cst_35 = arith.constant 1.000000e+00 : f32
    %63 = vector.broadcast %cst_35 : f32 to vector<8x128xf32>
    %64 = arith.addf %63, %62 : vector<8x128xf32>
    %65 = arith.divf %63, %64 : vector<8x128xf32>
    %66 = vector.extract_strided_slice %60 {offsets = [0, 64], sizes = [8, 32], strides = [1, 1]} : vector<8x128xf32> to vector<8x32xf32>
    %67 = math.tanh %66 : vector<8x32xf32>
    %68 = vector.extract_strided_slice %65 {offsets = [0, 32], sizes = [8, 32], strides = [1, 1]} : vector<8x128xf32> to vector<8x32xf32>
    %69 = arith.mulf %68, %57 : vector<8x32xf32>
    %70 = vector.extract_strided_slice %65 {offsets = [0, 0], sizes = [8, 32], strides = [1, 1]} : vector<8x128xf32> to vector<8x32xf32>
    %71 = arith.mulf %70, %67 : vector<8x32xf32>
    %72 = arith.addf %69, %71 : vector<8x32xf32>
    %73 = vector.extract_strided_slice %65 {offsets = [0, 96], sizes = [8, 32], strides = [1, 1]} : vector<8x128xf32> to vector<8x32xf32>
    %74 = math.tanh %72 : vector<8x32xf32>
    %75 = arith.mulf %73, %74 : vector<8x32xf32>
    %c8_36 = arith.constant 8 : index
    %c0_37 = arith.constant 0 : index
    %76 = vector.load %arg3[%c8_36, %c0_37] : memref<64x128xf32, #tpu.memory_space<vmem>>, vector<8x128xf32>
    %cst_38 = arith.constant dense<0.000000e+00> : vector<8x128xf32>
    %77 = tpu.matmul %75, %55, %cst_38 {dimension_numbers = #tpu.dot_dimension_numbers<[1], [0], [0], [1], [0, 0, 1, 1], [], []>} : vector<8x32xf32>, vector<32x128xf32>, vector<8x128xf32> -> vector<8x128xf32>
    %78 = arith.addf %76, %77 : vector<8x128xf32>
    %79 = arith.negf %78 : vector<8x128xf32>
    %80 = math.exp %79 : vector<8x128xf32>
    %cst_39 = arith.constant 1.000000e+00 : f32
    %81 = vector.broadcast %cst_39 : f32 to vector<8x128xf32>
    %82 = arith.addf %81, %80 : vector<8x128xf32>
    %83 = arith.divf %81, %82 : vector<8x128xf32>
    %84 = vector.extract_strided_slice %78 {offsets = [0, 64], sizes = [8, 32], strides = [1, 1]} : vector<8x128xf32> to vector<8x32xf32>
    %85 = math.tanh %84 : vector<8x32xf32>
    %86 = vector.extract_strided_slice %83 {offsets = [0, 32], sizes = [8, 32], strides = [1, 1]} : vector<8x128xf32> to vector<8x32xf32>
    %87 = arith.mulf %86, %72 : vector<8x32xf32>
    %88 = vector.extract_strided_slice %83 {offsets = [0, 0], sizes = [8, 32], strides = [1, 1]} : vector<8x128xf32> to vector<8x32xf32>
    %89 = arith.mulf %88, %85 : vector<8x32xf32>
    %90 = arith.addf %87, %89 : vector<8x32xf32>
    %91 = vector.extract_strided_slice %83 {offsets = [0, 96], sizes = [8, 32], strides = [1, 1]} : vector<8x128xf32> to vector<8x32xf32>
    %92 = math.tanh %90 : vector<8x32xf32>
    %93 = arith.mulf %91, %92 : vector<8x32xf32>
    %c16_40 = arith.constant 16 : index
    %c0_41 = arith.constant 0 : index
    %94 = vector.load %arg3[%c16_40, %c0_41] : memref<64x128xf32, #tpu.memory_space<vmem>>, vector<8x128xf32>
    %cst_42 = arith.constant dense<0.000000e+00> : vector<8x128xf32>
    %95 = tpu.matmul %93, %55, %cst_42 {dimension_numbers = #tpu.dot_dimension_numbers<[1], [0], [0], [1], [0, 0, 1, 1], [], []>} : vector<8x32xf32>, vector<32x128xf32>, vector<8x128xf32> -> vector<8x128xf32>
    %96 = arith.addf %94, %95 : vector<8x128xf32>
    %97 = arith.negf %96 : vector<8x128xf32>
    %98 = math.exp %97 : vector<8x128xf32>
    %cst_43 = arith.constant 1.000000e+00 : f32
    %99 = vector.broadcast %cst_43 : f32 to vector<8x128xf32>
    %100 = arith.addf %99, %98 : vector<8x128xf32>
    %101 = arith.divf %99, %100 : vector<8x128xf32>
    %102 = vector.extract_strided_slice %96 {offsets = [0, 64], sizes = [8, 32], strides = [1, 1]} : vector<8x128xf32> to vector<8x32xf32>
    %103 = math.tanh %102 : vector<8x32xf32>
    %104 = vector.extract_strided_slice %101 {offsets = [0, 32], sizes = [8, 32], strides = [1, 1]} : vector<8x128xf32> to vector<8x32xf32>
    %105 = arith.mulf %104, %90 : vector<8x32xf32>
    %106 = vector.extract_strided_slice %101 {offsets = [0, 0], sizes = [8, 32], strides = [1, 1]} : vector<8x128xf32> to vector<8x32xf32>
    %107 = arith.mulf %106, %103 : vector<8x32xf32>
    %108 = arith.addf %105, %107 : vector<8x32xf32>
    %109 = vector.extract_strided_slice %101 {offsets = [0, 96], sizes = [8, 32], strides = [1, 1]} : vector<8x128xf32> to vector<8x32xf32>
    %110 = math.tanh %108 : vector<8x32xf32>
    %111 = arith.mulf %109, %110 : vector<8x32xf32>
    %c24_44 = arith.constant 24 : index
    %c0_45 = arith.constant 0 : index
    %112 = vector.load %arg3[%c24_44, %c0_45] : memref<64x128xf32, #tpu.memory_space<vmem>>, vector<8x128xf32>
    %cst_46 = arith.constant dense<0.000000e+00> : vector<8x128xf32>
    %113 = tpu.matmul %111, %55, %cst_46 {dimension_numbers = #tpu.dot_dimension_numbers<[1], [0], [0], [1], [0, 0, 1, 1], [], []>} : vector<8x32xf32>, vector<32x128xf32>, vector<8x128xf32> -> vector<8x128xf32>
    %114 = arith.addf %112, %113 : vector<8x128xf32>
    %115 = arith.negf %114 : vector<8x128xf32>
    %116 = math.exp %115 : vector<8x128xf32>
    %cst_47 = arith.constant 1.000000e+00 : f32
    %117 = vector.broadcast %cst_47 : f32 to vector<8x128xf32>
    %118 = arith.addf %117, %116 : vector<8x128xf32>
    %119 = arith.divf %117, %118 : vector<8x128xf32>
    %120 = vector.extract_strided_slice %114 {offsets = [0, 64], sizes = [8, 32], strides = [1, 1]} : vector<8x128xf32> to vector<8x32xf32>
    %121 = math.tanh %120 : vector<8x32xf32>
    %122 = vector.extract_strided_slice %119 {offsets = [0, 32], sizes = [8, 32], strides = [1, 1]} : vector<8x128xf32> to vector<8x32xf32>
    %123 = arith.mulf %122, %108 : vector<8x32xf32>
    %124 = vector.extract_strided_slice %119 {offsets = [0, 0], sizes = [8, 32], strides = [1, 1]} : vector<8x128xf32> to vector<8x32xf32>
    %125 = arith.mulf %124, %121 : vector<8x32xf32>
    %126 = arith.addf %123, %125 : vector<8x32xf32>
    %127 = vector.extract_strided_slice %119 {offsets = [0, 96], sizes = [8, 32], strides = [1, 1]} : vector<8x128xf32> to vector<8x32xf32>
    %128 = math.tanh %126 : vector<8x32xf32>
    %129 = arith.mulf %127, %128 : vector<8x32xf32>
    %c32_48 = arith.constant 32 : index
    %c0_49 = arith.constant 0 : index
    %130 = vector.load %arg3[%c32_48, %c0_49] : memref<64x128xf32, #tpu.memory_space<vmem>>, vector<8x128xf32>
    %cst_50 = arith.constant dense<0.000000e+00> : vector<8x128xf32>
    %131 = tpu.matmul %129, %55, %cst_50 {dimension_numbers = #tpu.dot_dimension_numbers<[1], [0], [0], [1], [0, 0, 1, 1], [], []>} : vector<8x32xf32>, vector<32x128xf32>, vector<8x128xf32> -> vector<8x128xf32>
    %132 = arith.addf %130, %131 : vector<8x128xf32>
    %133 = arith.negf %132 : vector<8x128xf32>
    %134 = math.exp %133 : vector<8x128xf32>
    %cst_51 = arith.constant 1.000000e+00 : f32
    %135 = vector.broadcast %cst_51 : f32 to vector<8x128xf32>
    %136 = arith.addf %135, %134 : vector<8x128xf32>
    %137 = arith.divf %135, %136 : vector<8x128xf32>
    %138 = vector.extract_strided_slice %132 {offsets = [0, 64], sizes = [8, 32], strides = [1, 1]} : vector<8x128xf32> to vector<8x32xf32>
    %139 = math.tanh %138 : vector<8x32xf32>
    %140 = vector.extract_strided_slice %137 {offsets = [0, 32], sizes = [8, 32], strides = [1, 1]} : vector<8x128xf32> to vector<8x32xf32>
    %141 = arith.mulf %140, %126 : vector<8x32xf32>
    %142 = vector.extract_strided_slice %137 {offsets = [0, 0], sizes = [8, 32], strides = [1, 1]} : vector<8x128xf32> to vector<8x32xf32>
    %143 = arith.mulf %142, %139 : vector<8x32xf32>
    %144 = arith.addf %141, %143 : vector<8x32xf32>
    %145 = vector.extract_strided_slice %137 {offsets = [0, 96], sizes = [8, 32], strides = [1, 1]} : vector<8x128xf32> to vector<8x32xf32>
    %146 = math.tanh %144 : vector<8x32xf32>
    %147 = arith.mulf %145, %146 : vector<8x32xf32>
    %c40_52 = arith.constant 40 : index
    %c0_53 = arith.constant 0 : index
    %148 = vector.load %arg3[%c40_52, %c0_53] : memref<64x128xf32, #tpu.memory_space<vmem>>, vector<8x128xf32>
    %cst_54 = arith.constant dense<0.000000e+00> : vector<8x128xf32>
    %149 = tpu.matmul %147, %55, %cst_54 {dimension_numbers = #tpu.dot_dimension_numbers<[1], [0], [0], [1], [0, 0, 1, 1], [], []>} : vector<8x32xf32>, vector<32x128xf32>, vector<8x128xf32> -> vector<8x128xf32>
    %150 = arith.addf %148, %149 : vector<8x128xf32>
    %151 = arith.negf %150 : vector<8x128xf32>
    %152 = math.exp %151 : vector<8x128xf32>
    %cst_55 = arith.constant 1.000000e+00 : f32
    %153 = vector.broadcast %cst_55 : f32 to vector<8x128xf32>
    %154 = arith.addf %153, %152 : vector<8x128xf32>
    %155 = arith.divf %153, %154 : vector<8x128xf32>
    %156 = vector.extract_strided_slice %150 {offsets = [0, 64], sizes = [8, 32], strides = [1, 1]} : vector<8x128xf32> to vector<8x32xf32>
    %157 = math.tanh %156 : vector<8x32xf32>
    %158 = vector.extract_strided_slice %155 {offsets = [0, 32], sizes = [8, 32], strides = [1, 1]} : vector<8x128xf32> to vector<8x32xf32>
    %159 = arith.mulf %158, %144 : vector<8x32xf32>
    %160 = vector.extract_strided_slice %155 {offsets = [0, 0], sizes = [8, 32], strides = [1, 1]} : vector<8x128xf32> to vector<8x32xf32>
    %161 = arith.mulf %160, %157 : vector<8x32xf32>
    %162 = arith.addf %159, %161 : vector<8x32xf32>
    %163 = vector.extract_strided_slice %155 {offsets = [0, 96], sizes = [8, 32], strides = [1, 1]} : vector<8x128xf32> to vector<8x32xf32>
    %164 = math.tanh %162 : vector<8x32xf32>
    %165 = arith.mulf %163, %164 : vector<8x32xf32>
    %c48_56 = arith.constant 48 : index
    %c0_57 = arith.constant 0 : index
    %166 = vector.load %arg3[%c48_56, %c0_57] : memref<64x128xf32, #tpu.memory_space<vmem>>, vector<8x128xf32>
    %cst_58 = arith.constant dense<0.000000e+00> : vector<8x128xf32>
    %167 = tpu.matmul %165, %55, %cst_58 {dimension_numbers = #tpu.dot_dimension_numbers<[1], [0], [0], [1], [0, 0, 1, 1], [], []>} : vector<8x32xf32>, vector<32x128xf32>, vector<8x128xf32> -> vector<8x128xf32>
    %168 = arith.addf %166, %167 : vector<8x128xf32>
    %169 = arith.negf %168 : vector<8x128xf32>
    %170 = math.exp %169 : vector<8x128xf32>
    %cst_59 = arith.constant 1.000000e+00 : f32
    %171 = vector.broadcast %cst_59 : f32 to vector<8x128xf32>
    %172 = arith.addf %171, %170 : vector<8x128xf32>
    %173 = arith.divf %171, %172 : vector<8x128xf32>
    %174 = vector.extract_strided_slice %168 {offsets = [0, 64], sizes = [8, 32], strides = [1, 1]} : vector<8x128xf32> to vector<8x32xf32>
    %175 = math.tanh %174 : vector<8x32xf32>
    %176 = vector.extract_strided_slice %173 {offsets = [0, 32], sizes = [8, 32], strides = [1, 1]} : vector<8x128xf32> to vector<8x32xf32>
    %177 = arith.mulf %176, %162 : vector<8x32xf32>
    %178 = vector.extract_strided_slice %173 {offsets = [0, 0], sizes = [8, 32], strides = [1, 1]} : vector<8x128xf32> to vector<8x32xf32>
    %179 = arith.mulf %178, %175 : vector<8x32xf32>
    %180 = arith.addf %177, %179 : vector<8x32xf32>
    %181 = vector.extract_strided_slice %173 {offsets = [0, 96], sizes = [8, 32], strides = [1, 1]} : vector<8x128xf32> to vector<8x32xf32>
    %182 = math.tanh %180 : vector<8x32xf32>
    %183 = arith.mulf %181, %182 : vector<8x32xf32>
    %c56_60 = arith.constant 56 : index
    %c0_61 = arith.constant 0 : index
    %184 = vector.load %arg3[%c56_60, %c0_61] : memref<64x128xf32, #tpu.memory_space<vmem>>, vector<8x128xf32>
    %cst_62 = arith.constant dense<0.000000e+00> : vector<8x128xf32>
    %185 = tpu.matmul %183, %55, %cst_62 {dimension_numbers = #tpu.dot_dimension_numbers<[1], [0], [0], [1], [0, 0, 1, 1], [], []>} : vector<8x32xf32>, vector<32x128xf32>, vector<8x128xf32> -> vector<8x128xf32>
    %186 = arith.addf %184, %185 : vector<8x128xf32>
    %187 = arith.negf %186 : vector<8x128xf32>
    %188 = math.exp %187 : vector<8x128xf32>
    %cst_63 = arith.constant 1.000000e+00 : f32
    %189 = vector.broadcast %cst_63 : f32 to vector<8x128xf32>
    %190 = arith.addf %189, %188 : vector<8x128xf32>
    %191 = arith.divf %189, %190 : vector<8x128xf32>
    %192 = vector.extract_strided_slice %186 {offsets = [0, 64], sizes = [8, 32], strides = [1, 1]} : vector<8x128xf32> to vector<8x32xf32>
    %193 = math.tanh %192 : vector<8x32xf32>
    %194 = vector.extract_strided_slice %191 {offsets = [0, 32], sizes = [8, 32], strides = [1, 1]} : vector<8x128xf32> to vector<8x32xf32>
    %195 = arith.mulf %194, %180 : vector<8x32xf32>
    %196 = vector.extract_strided_slice %191 {offsets = [0, 0], sizes = [8, 32], strides = [1, 1]} : vector<8x128xf32> to vector<8x32xf32>
    %197 = arith.mulf %196, %193 : vector<8x32xf32>
    %198 = arith.addf %195, %197 : vector<8x32xf32>
    %199 = vector.extract_strided_slice %191 {offsets = [0, 96], sizes = [8, 32], strides = [1, 1]} : vector<8x128xf32> to vector<8x32xf32>
    %200 = math.tanh %198 : vector<8x32xf32>
    %201 = arith.mulf %199, %200 : vector<8x32xf32>
    %c424 = arith.constant 424 : index
    %c0_64 = arith.constant 0 : index
    %202 = vector.load %arg1[%c424, %c0_64] : memref<456x128xf32, #tpu.memory_space<vmem>>, vector<32x128xf32>
    %cst_65 = arith.constant dense<0.000000e+00> : vector<8x128xf32>
    %203 = tpu.matmul %201, %202, %cst_65 {dimension_numbers = #tpu.dot_dimension_numbers<[1], [0], [0], [1], [0, 0, 1, 1], [], []>} : vector<8x32xf32>, vector<32x128xf32>, vector<8x128xf32> -> vector<8x128xf32>
    %c5 = arith.constant 5 : index
    %c0_66 = arith.constant 0 : index
    %204 = vector.load %arg1[%c5, %c0_66] : memref<456x128xf32, #tpu.memory_space<vmem>>, vector<1x128xf32>
    %205 = vector.broadcast %204 : vector<1x128xf32> to vector<8x128xf32>
    %206 = arith.addf %203, %205 : vector<8x128xf32>
    %c0_67 = arith.constant 0 : index
    %c0_68 = arith.constant 0 : index
    %207 = vector.load %arg2[%c0_67, %c0_68] : memref<8x128xf32, #tpu.memory_space<vmem>>, vector<8x128xf32>
    tpu.vector_store %arg2[%c0_67, %c0_68], %206 {strides = array<i32>} : memref<8x128xf32, #tpu.memory_space<vmem>>, vector<8x128xf32>,
    return
  }
}

</mosaic_0001>

<llo_original>
// kernel: tile.31
$region0: #{tile.31}
  #allocation0 [shape = 's32[1]{0}', space=sflag, size = 0x4, scoped, tag = 'scoped memory for tile.31']
  %s0 = inlined_call_operand.vmem [shape: f32[32], index: 0, kind: input, shape index: {}]
  %s1 = inlined_call_operand.vmem [shape: f32[4,32], index: 1, kind: output, shape index: {}]
  // Predicated region
  $region2: #{tile.31} parent=0 // pred_check
    _
  $region3: #{tile.31} parent=0 // pred_check_branch
    %3 = sbr.rel (0) target = $region5
  $region4: #{tile.31} parent=0 // pred_region
    _
  $region5: #{tile.31} parent=0 // pred_fallthru
    _
  %v4 = vld [vmem:[%s0] ss:$0 sm:$0xff]
  %5 = vst [vmem:[%s1] sm:$0xf] %v4

// kernel: tile.56
$region0: #{tile.56}
  #allocation0 [shape = 's32[1]{0}', space=sflag, size = 0x4, scoped, tag = 'scoped memory for tile.56']
  %s0 = inlined_call_operand.vmem [shape: f32[2], index: 0, kind: input, shape index: {}]
  %s1 = inlined_call_operand.vmem [shape: f32[8,2], index: 1, kind: output, shape index: {}]
  // Predicated region
  $region2: #{tile.56} parent=0 // pred_check
    _
  $region3: #{tile.56} parent=0 // pred_check_branch
    %3 = sbr.rel (0) target = $region5
  $region4: #{tile.56} parent=0 // pred_region
    _
  $region5: #{tile.56} parent=0 // pred_fallthru
    _
  %v4 = vld [vmem:[%s0] ss:$0 sm:$0xff]
  %5 = vst [vmem:[%s1] sm:$0xff] %v4

// kernel: deepset_rnn_forward.1
$region0: #{deepset_rnn_forward.1}
  #allocation0 [shape = 'u32[]', space=smem, size = 0x4, offset = 0x4, fixed_abs, tag = 'smem constant byte address 0x4 - core index']
  #allocation1 [shape = 'u32[72,128]{1,0:T(1,128)}', space=vmem, size = 0x9000, scoped, tag = 'internal scratch']
  #allocation2 [shape = 'f32[64,128]{1,0:T(8,128)}', space=vmem, size = 0x8000, scoped, tag = 'scratch operand']
  %s0 = inlined_call_operand.vmem [shape: f32[80,128], index: 0, kind: input, shape index: {}]
  %s1 = inlined_call_operand.vmem [shape: f32[456,128], index: 1, kind: input, shape index: {}]
  %s2 = inlined_call_operand.vmem [shape: f32[8,128], index: 2, kind: output, shape index: {}]
  %s3 = sld [smem:[#allocation0]]
  $region18: #{deepset_rnn_forward.1} parent=0
    _
  %s5 = ssub.s32 1, %s3
  %s6 = scalar_select 0, %s5, %s3
  // Predicated region
  $region2: #{deepset_rnn_forward.1} parent=0 // pred_check
    _
  $region3: #{deepset_rnn_forward.1} parent=0 // pred_check_branch
    %8 = sbr.rel (0) target = $region5
  $region4: #{deepset_rnn_forward.1} parent=0 // pred_region
    _
  $region5: #{deepset_rnn_forward.1} parent=0 // pred_fallthru
    _
  // Predicated region
  $region6: #{deepset_rnn_forward.1} parent=0 // pred_check
    _
  $region7: #{deepset_rnn_forward.1} parent=0 // pred_check_branch
    %10 = sbr.rel (0) target = $region9
  $region8: #{deepset_rnn_forward.1} parent=0 // pred_region
    _
  $region9: #{deepset_rnn_forward.1} parent=0 // pred_fallthru
    _
  %v11 = vld [vmem:[%s0] sm:$0xff]
  %v12 = vld [vmem:[%s0 + $0x8] sm:$0xff]
  %v13 = vld [vmem:[%s0 + $0x10] sm:$0xff]
  %v14 = vld [vmem:[%s0 + $0x18] sm:$0xff]
  %v15 = vld [vmem:[%s0 + $0x20] sm:$0xff]
  %v16 = vld [vmem:[%s0 + $0x28] sm:$0xff]
  %v17 = vld [vmem:[%s0 + $0x30] sm:$0xff]
  %v18 = vld [vmem:[%s0 + $0x38] sm:$0xff]
  %v19 = vld [vmem:[%s1] sm:$0x1]
  %v20 = vperm.slane %v19, 0
  %v21 = vmul.f32 %v11, %v20
  %v22 = vmul.f32 %v12, %v20
  %v23 = vmul.f32 %v13, %v20
  %v24 = vmul.f32 %v14, %v20
  %v25 = vmul.f32 %v15, %v20
  %v26 = vmul.f32 %v16, %v20
  %v27 = vmul.f32 %v17, %v20
  %v28 = vmul.f32 %v18, %v20
  %v29 = vld [vmem:[%s1 + $0x1] sm:$0x1]
  %v30 = vperm.slane %v29, 0
  %v31 = vadd.f32 %v21, %v30
  %v32 = vadd.f32 %v22, %v30
  %v33 = vadd.f32 %v23, %v30
  %v34 = vadd.f32 %v24, %v30
  %v35 = vadd.f32 %v25, %v30
  %v36 = vadd.f32 %v26, %v30
  %v37 = vadd.f32 %v27, %v30
  %v38 = vadd.f32 %v28, %v30
  %v39 = vmax.f32 %v31, 0.0
  %v40 = vmax.f32 %v32, 0.0
  %v41 = vmax.f32 %v33, 0.0
  %v42 = vmax.f32 %v34, 0.0
  %v43 = vmax.f32 %v35, 0.0
  %v44 = vmax.f32 %v36, 0.0
  %v45 = vmax.f32 %v37, 0.0
  %v46 = vmax.f32 %v38, 0.0
  %v47 = vld [vmem:[%s1 + $0x8] sm:$0xff]
  %v48 = vld [vmem:[%s1 + $0x10] sm:$0xff]
  %v49 = vld [vmem:[%s1 + $0x18] sm:$0xff]
  %v50 = vld [vmem:[%s1 + $0x20] sm:$0xff]
  %v51 = vld [vmem:[%s1 + $0x28] sm:$0xff]
  %v52 = vld [vmem:[%s1 + $0x30] sm:$0xff]
  %v53 = vld [vmem:[%s1 + $0x38] sm:$0xff]
  %v54 = vld [vmem:[%s1 + $0x40] sm:$0xff]
  %v55 = vld [vmem:[%s1 + $0x48] sm:$0xff]
  %v56 = vld [vmem:[%s1 + $0x50] sm:$0xff]
  %v57 = vld [vmem:[%s1 + $0x58] sm:$0xff]
  %v58 = vld [vmem:[%s1 + $0x60] sm:$0xff]
  %v59 = vld [vmem:[%s1 + $0x68] sm:$0xff]
  %v60 = vld [vmem:[%s1 + $0x70] sm:$0xff]
  %v61 = vld [vmem:[%s1 + $0x78] sm:$0xff]
  %v62 = vld [vmem:[%s1 + $0x80] sm:$0xff]
  %v63 = vld [vmem:[%s1 + $0x2] sm:$0x1]
  %v64 = vperm.slane %v63, 0
  %65 = vmatpush.msra.mxu0 %v62
  %66 = vmatpush.msra.mxu0 %v61
  %67 = vmatpush.msra.mxu0 %v60
  %68 = vmatpush.msra.mxu0 %v59
  %69 = vmatpush.msra.mxu0 %v58
  %70 = vmatpush.msra.mxu0 %v57
  %71 = vmatpush.msra.mxu0 %v56
  %72 = vmatpush.msra.mxu0 %v55
  %73 = vmatpush.msra.mxu0 %v54
  %74 = vmatpush.msra.mxu0 %v53
  %75 = vmatpush.msra.mxu0 %v52
  %76 = vmatpush.msra.mxu0 %v51
  %77 = vmatpush.msra.mxu0 %v50
  %78 = vmatpush.msra.mxu0 %v49
  %79 = vmatpush.msra.mxu0 %v48
  %80 = vmatpush.msra.mxu0 %v47
  %81 = vmatmul.f32.gmra.mxu0 %v39
  %v82 = vpop.f32.mrf.mxu0
  %v83 = vadd.f32 %v64, %v82
  %84 = vmatmul.f32.gmra.mxu0 %v40
  %v85 = vpop.f32.mrf.mxu0
  %v86 = vadd.f32 %v64, %v85
  %87 = vmatmul.f32.gmra.mxu0 %v41
  %v88 = vpop.f32.mrf.mxu0
  %v89 = vadd.f32 %v64, %v88
  %90 = vmatmul.f32.gmra.mxu0 %v42
  %v91 = vpop.f32.mrf.mxu0
  %v92 = vadd.f32 %v64, %v91
  %93 = vmatmul.f32.gmra.mxu0 %v43
  %v94 = vpop.f32.mrf.mxu0
  %v95 = vadd.f32 %v64, %v94
  %96 = vmatmul.f32.gmra.mxu0 %v44
  %v97 = vpop.f32.mrf.mxu0
  %v98 = vadd.f32 %v64, %v97
  %99 = vmatmul.f32.gmra.mxu0 %v45
  %v100 = vpop.f32.mrf.mxu0
  %v101 = vadd.f32 %v64, %v100
  %102 = vmatmul.f32.gmra.mxu0 %v46
  %v103 = vpop.f32.mrf.mxu0
  %v104 = vadd.f32 %v64, %v103
  %105 = vdwg.mxu0
  %v106 = vmax.f32 %v83, 0.0
  %v107 = vmax.f32 %v86, 0.0
  %v108 = vmax.f32 %v89, 0.0
  %v109 = vmax.f32 %v92, 0.0
  %v110 = vmax.f32 %v95, 0.0
  %v111 = vmax.f32 %v98, 0.0
  %v112 = vmax.f32 %v101, 0.0
  %v113 = vmax.f32 %v104, 0.0
  %v114 = vld [vmem:[%s1 + $0x88] sm:$0xff]
  %v115 = vld [vmem:[%s1 + $0x90] sm:$0xff]
  %v116 = vld [vmem:[%s1 + $0x98] sm:$0xff]
  %v117 = vld [vmem:[%s1 + $0xa0] sm:$0xff]
  %v118 = vld [vmem:[%s1 + $0xa8] sm:$0xff]
  %v119 = vld [vmem:[%s1 + $0xb0] sm:$0xff]
  %v120 = vld [vmem:[%s1 + $0xb8] sm:$0xff]
  %v121 = vld [vmem:[%s1 + $0xc0] sm:$0xff]
  %v122 = vld [vmem:[%s1 + $0xc8] sm:$0xff]
  %v123 = vld [vmem:[%s1 + $0xd0] sm:$0xff]
  %v124 = vld [vmem:[%s1 + $0xd8] sm:$0xff]
  %v125 = vld [vmem:[%s1 + $0xe0] sm:$0xff]
  %v126 = vld [vmem:[%s1 + $0xe8] sm:$0xff]
  %v127 = vld [vmem:[%s1 + $0xf0] sm:$0xff]
  %v128 = vld [vmem:[%s1 + $0xf8] sm:$0xff]
  %v129 = vld [vmem:[%s1 + $0x100] sm:$0xff]
  %v130 = vld [vmem:[%s1 + $0x3] sm:$0x1]
  %v131 = vperm.slane %v130, 0
  %132 = vmatpush.msra.mxu0 %v129
  %133 = vmatpush.msra.mxu0 %v128
  %134 = vmatpush.msra.mxu0 %v127
  %135 = vmatpush.msra.mxu0 %v126
  %136 = vmatpush.msra.mxu0 %v125
  %137 = vmatpush.msra.mxu0 %v124
  %138 = vmatpush.msra.mxu0 %v123
  %139 = vmatpush.msra.mxu0 %v122
  %140 = vmatpush.msra.mxu0 %v121
  %141 = vmatpush.msra.mxu0 %v120
  %142 = vmatpush.msra.mxu0 %v119
  %143 = vmatpush.msra.mxu0 %v118
  %144 = vmatpush.msra.mxu0 %v117
  %145 = vmatpush.msra.mxu0 %v116
  %146 = vmatpush.msra.mxu0 %v115
  %147 = vmatpush.msra.mxu0 %v114
  %148 = vmatmul.f32.gmra.mxu0 %v106
  %v149 = vpop.f32.mrf.mxu0
  %v150 = vadd.f32 %v131, %v149
  %151 = vmatmul.f32.gmra.mxu0 %v107
  %v152 = vpop.f32.mrf.mxu0
  %v153 = vadd.f32 %v131, %v152
  %154 = vmatmul.f32.gmra.mxu0 %v108
  %v155 = vpop.f32.mrf.mxu0
  %v156 = vadd.f32 %v131, %v155
  %157 = vmatmul.f32.gmra.mxu0 %v109
  %v158 = vpop.f32.mrf.mxu0
  %v159 = vadd.f32 %v131, %v158
  %160 = vmatmul.f32.gmra.mxu0 %v110
  %v161 = vpop.f32.mrf.mxu0
  %v162 = vadd.f32 %v131, %v161
  %163 = vmatmul.f32.gmra.mxu0 %v111
  %v164 = vpop.f32.mrf.mxu0
  %v165 = vadd.f32 %v131, %v164
  %166 = vmatmul.f32.gmra.mxu0 %v112
  %v167 = vpop.f32.mrf.mxu0
  %v168 = vadd.f32 %v131, %v167
  %169 = vmatmul.f32.gmra.mxu0 %v113
  %v170 = vpop.f32.mrf.mxu0
  %v171 = vadd.f32 %v131, %v170
  %172 = vdwg.mxu0
  %v173 = vmax.f32 %v150, 0.0
  %v174 = vmax.f32 %v153, 0.0
  %v175 = vmax.f32 %v156, 0.0
  %v176 = vmax.f32 %v159, 0.0
  %v177 = vmax.f32 %v162, 0.0
  %v178 = vmax.f32 %v165, 0.0
  %v179 = vmax.f32 %v168, 0.0
  %v180 = vmax.f32 %v171, 0.0
  %v181 = vadd.f32 %v173, %v175
  %v182 = vadd.f32 %v174, %v176
  %v183 = vadd.f32 %v177, %v179
  %v184 = vadd.f32 %v178, %v180
  %v185 = vadd.f32 %v181, %v183
  %v186 = vadd.f32 %v182, %v184
  %v187 = vld [vmem:[%s1 + $0x108] sm:$0xff]
  %v188 = vld [vmem:[%s1 + $0x110] sm:$0xff]
  %v189 = vld [vmem:[%s1 + $0x118] sm:$0xff]
  %v190 = vld [vmem:[%s1 + $0x120] sm:$0xff]
  %v191 = vld [vmem:[%s1 + $0x128] sm:$0xff]
  %v192 = vld [vmem:[%s1 + $0x130] sm:$0xff]
  %v193 = vld [vmem:[%s1 + $0x138] sm:$0xff]
  %v194 = vld [vmem:[%s1 + $0x140] sm:$0xff]
  %v195 = vld [vmem:[%s1 + $0x148] sm:$0xff]
  %v196 = vld [vmem:[%s1 + $0x150] sm:$0xff]
  %v197 = vld [vmem:[%s1 + $0x158] sm:$0xff]
  %v198 = vld [vmem:[%s1 + $0x160] sm:$0xff]
  %v199 = vld [vmem:[%s1 + $0x168] sm:$0xff]
  %v200 = vld [vmem:[%s1 + $0x170] sm:$0xff]
  %v201 = vld [vmem:[%s1 + $0x178] sm:$0xff]
  %v202 = vld [vmem:[%s1 + $0x180] sm:$0xff]
  %203 = vmatpush.msra.mxu0 %v202
  %204 = vmatpush.msra.mxu0 %v201
  %205 = vmatpush.msra.mxu0 %v200
  %206 = vmatpush.msra.mxu0 %v199
  %207 = vmatpush.msra.mxu0 %v198
  %208 = vmatpush.msra.mxu0 %v197
  %209 = vmatpush.msra.mxu0 %v196
  %210 = vmatpush.msra.mxu0 %v195
  %211 = vmatpush.msra.mxu0 %v194
  %212 = vmatpush.msra.mxu0 %v193
  %213 = vmatpush.msra.mxu0 %v192
  %214 = vmatpush.msra.mxu0 %v191
  %215 = vmatpush.msra.mxu0 %v190
  %216 = vmatpush.msra.mxu0 %v189
  %217 = vmatpush.msra.mxu0 %v188
  %218 = vmatpush.msra.mxu0 %v187
  %219 = vmatmul.f32.gmra.mxu0 %v185
  %v220 = vpop.f32.mrf.mxu0
  %v221 = vadd.f32 0.0, %v220
  %222 = vmatmul.f32.gmra.mxu0 %v186
  %v223 = vpop.f32.mrf.mxu0
  %v224 = vadd.f32 0.0, %v223
  %225 = vdwg.mxu0
  %v226 = vld [vmem:[%s0 + $0x40] sm:$0xff]
  %v227 = vld [vmem:[%s0 + $0x48] sm:$0xff]
  %v228 = vmul.f32 %v221, %v226
  %v229 = vmul.f32 %v224, %v227
  %v230 = vld [vmem:[%s1 + $0x4] sm:$0x1]
  %v231 = vperm.slane %v230, 0
  %v232 = vadd.f32 %v228, %v231
  %v233 = vadd.f32 %v229, %v231
  %234 = vst [vmem:[#allocation2] sm:$0xff] 0.0
  %235 = vst [vmem:[#allocation2 + $0x8] sm:$0xff] 0.0
  %236 = vst [vmem:[#allocation2 + $0x10] sm:$0xff] 0.0
  %237 = vst [vmem:[#allocation2 + $0x18] sm:$0xff] 0.0
  %238 = vst [vmem:[#allocation2 + $0x20] sm:$0xff] 0.0
  %239 = vst [vmem:[#allocation2 + $0x28] sm:$0xff] 0.0
  %240 = vst [vmem:[#allocation2 + $0x30] sm:$0xff] 0.0
  %241 = vst [vmem:[#allocation2 + $0x38] sm:$0xff] 0.0
  %242 = vst [vmem:[#allocation2] sm:$0x3] %v232
  %243 = vst [vmem:[#allocation2 + $0x6] sm:$0xc] %v232
  %244 = vst [vmem:[#allocation2 + $0xc] sm:$0x30] %v232
  %245 = vst [vmem:[#allocation2 + $0x12] sm:$0xc0] %v232
  %246 = vst [vmem:[#allocation2 + $0x20] sm:$0x3] %v233
  %247 = vst [vmem:[#allocation2 + $0x26] sm:$0xc] %v233
  %248 = vst [vmem:[#allocation2 + $0x2c] sm:$0x30] %v233
  %249 = vst [vmem:[#allocation2 + $0x32] sm:$0xc0] %v233
  %v250 = vld [vmem:[%s1 + $0x188] sm:$0xff]
  %v251 = vld [vmem:[%s1 + $0x190] sm:$0xff]
  %v252 = vld [vmem:[%s1 + $0x198] sm:$0xff]
  %v253 = vld [vmem:[%s1 + $0x1a0] sm:$0xff]
  %v254 = vld [vmem:[#allocation2] sm:$0xff]
  %vm255 = vcmask 261120
  %v257 = vsel %vm255, 0.0, 0
  %259 = vmatpush.msra.mxu0 0.0
  %260 = vmatpush.msra.mxu0 0.0
  %261 = vmatpush.msra.mxu0 0.0
  %262 = vmatpush.msra.mxu0 0.0
  %263 = vmatpush.msra.mxu0 0.0
  %264 = vmatpush.msra.mxu0 0.0
  %265 = vmatpush.msra.mxu0 0.0
  %266 = vmatpush.msra.mxu0 0.0
  %267 = vmatpush.msra.mxu0 0.0
  %268 = vmatpush.msra.mxu0 0.0
  %269 = vmatpush.msra.mxu0 0.0
  %270 = vmatpush.msra.mxu0 0.0
  %271 = vmatpush.msra.mxu0 %v253
  %272 = vmatpush.msra.mxu0 %v252
  %273 = vmatpush.msra.mxu0 %v251
  %274 = vmatpush.msra.mxu0 %v250
  %275 = vmatmul.f32.gmra.mxu0 %v257
  %v276 = vpop.f32.mrf.mxu0
  %v277 = vadd.f32 0.0, %v276
  %278 = vdwg.mxu0
  %v279 = vadd.f32 %v254, %v277
  %v280 = vxor.u32 %v279, 2147483648
  %v281 = vmul.f32 %v280, 1.442695
  %v282 = vpow.pop %v281
  %v283 = vadd.f32 %v282, 1.0
  %v284 = vrcp.pop %v283
  %v285 = vmul.f32 %v283, %v284
  %v286 = vsub.f32 1.0, %v285
  %v287 = vmul.f32 %v284, %v286
  %v288 = vadd.f32 %v284, %v287
  %vm289 = vweird.f32 %v283
  %vm290 = vweird.f32 %v284
  %vm291 = vmor %vm289, %vm290
  %v292 = vsel %vm291, %v284, %v288
  %v293 = vand.u32 2147483647, %v283
  %vm294 = vcmp.eq.f32.partialorder %v293, 8.507059e+37
  %v295 = vand.u32 %v283, 2147483648
  %v296 = vor.u32 1.1754944e-38, %v295
  %v297 = vsel %vm294, %v296, %v292
  %v298 = vmul.f32 1.0, %v297
  %v299 = vtanh.pop %v279
  %v300 = vmul.f32 %v298, 0.0
  %302 = vrot.lane.b32.xlu0 %v299, 64
  %v303 = vpop.permute.xlu0 %302
  %v305 = vmul.f32 %v298, %v303
  %307 = vrot.lane.b32.xlu0 %v305, 32
  %v308 = vpop.permute.xlu0 %307
  %v310 = vadd.f32 %v300, %v308
  %v311 = vtanh.pop %v310
  %313 = vrot.lane.b32.xlu0 %v311, 64
  %v314 = vpop.permute.xlu0 %313
  %v316 = vmul.f32 %v298, %v314
  %v317 = vld [vmem:[#allocation2 + $0x8] sm:$0xff]
  %319 = vrot.lane.b32.xlu0 %v316, 32
  %v320 = vpop.permute.xlu0 %319
  %v321 = vsel %vm255, %v320, 0
  %323 = vmatpush.msra.mxu0 0.0
  %324 = vmatpush.msra.mxu0 0.0
  %325 = vmatpush.msra.mxu0 0.0
  %326 = vmatpush.msra.mxu0 0.0
  %327 = vmatpush.msra.mxu0 0.0
  %328 = vmatpush.msra.mxu0 0.0
  %329 = vmatpush.msra.mxu0 0.0
  %330 = vmatpush.msra.mxu0 0.0
  %331 = vmatpush.msra.mxu0 0.0
  %332 = vmatpush.msra.mxu0 0.0
  %333 = vmatpush.msra.mxu0 0.0
  %334 = vmatpush.msra.mxu0 0.0
  %335 = vmatpush.msra.mxu0 %v253
  %336 = vmatpush.msra.mxu0 %v252
  %337 = vmatpush.msra.mxu0 %v251
  %338 = vmatpush.msra.mxu0 %v250
  %339 = vmatmul.f32.gmra.mxu0 %v321
  %v340 = vpop.f32.mrf.mxu0
  %v341 = vadd.f32 0.0, %v340
  %342 = vdwg.mxu0
  %v343 = vadd.f32 %v317, %v341
  %v344 = vxor.u32 %v343, 2147483648
  %v345 = vmul.f32 %v344, 1.442695
  %v346 = vpow.pop %v345
  %v347 = vadd.f32 %v346, 1.0
  %v348 = vrcp.pop %v347
  %v349 = vmul.f32 %v347, %v348
  %v350 = vsub.f32 1.0, %v349
  %v351 = vmul.f32 %v348, %v350
  %v352 = vadd.f32 %v348, %v351
  %vm353 = vweird.f32 %v347
  %vm354 = vweird.f32 %v348
  %vm355 = vmor %vm353, %vm354
  %v356 = vsel %vm355, %v348, %v352
  %v357 = vand.u32 2147483647, %v347
  %vm358 = vcmp.eq.f32.partialorder %v357, 8.507059e+37
  %v359 = vand.u32 %v347, 2147483648
  %v360 = vor.u32 1.1754944e-38, %v359
  %v361 = vsel %vm358, %v360, %v356
  %v362 = vmul.f32 1.0, %v361
  %v363 = vtanh.pop %v343
  %v364 = vmul.f32 %v362, %v310
  %366 = vrot.lane.b32.xlu0 %v363, 64
  %v367 = vpop.permute.xlu0 %366
  %v369 = vmul.f32 %v362, %v367
  %371 = vrot.lane.b32.xlu0 %v369, 32
  %v372 = vpop.permute.xlu0 %371
  %v374 = vadd.f32 %v364, %v372
  %v375 = vtanh.pop %v374
  %377 = vrot.lane.b32.xlu0 %v375, 64
  %v378 = vpop.permute.xlu0 %377
  %v380 = vmul.f32 %v362, %v378
  %v381 = vld [vmem:[#allocation2 + $0x10] sm:$0xff]
  %383 = vrot.lane.b32.xlu0 %v380, 32
  %v384 = vpop.permute.xlu0 %383
  %v385 = vsel %vm255, %v384, 0
  %387 = vmatpush.msra.mxu0 0.0
  %388 = vmatpush.msra.mxu0 0.0
  %389 = vmatpush.msra.mxu0 0.0
  %390 = vmatpush.msra.mxu0 0.0
  %391 = vmatpush.msra.mxu0 0.0
  %392 = vmatpush.msra.mxu0 0.0
  %393 = vmatpush.msra.mxu0 0.0
  %394 = vmatpush.msra.mxu0 0.0
  %395 = vmatpush.msra.mxu0 0.0
  %396 = vmatpush.msra.mxu0 0.0
  %397 = vmatpush.msra.mxu0 0.0
  %398 = vmatpush.msra.mxu0 0.0
  %399 = vmatpush.msra.mxu0 %v253
  %400 = vmatpush.msra.mxu0 %v252
  %401 = vmatpush.msra.mxu0 %v251
  %402 = vmatpush.msra.mxu0 %v250
  %403 = vmatmul.f32.gmra.mxu0 %v385
  %v404 = vpop.f32.mrf.mxu0
  %v405 = vadd.f32 0.0, %v404
  %406 = vdwg.mxu0
  %v407 = vadd.f32 %v381, %v405
  %v408 = vxor.u32 %v407, 2147483648
  %v409 = vmul.f32 %v408, 1.442695
  %v410 = vpow.pop %v409
  %v411 = vadd.f32 %v410, 1.0
  %v412 = vrcp.pop %v411
  %v413 = vmul.f32 %v411, %v412
  %v414 = vsub.f32 1.0, %v413
  %v415 = vmul.f32 %v412, %v414
  %v416 = vadd.f32 %v412, %v415
  %vm417 = vweird.f32 %v411
  %vm418 = vweird.f32 %v412
  %vm419 = vmor %vm417, %vm418
  %v420 = vsel %vm419, %v412, %v416
  %v421 = vand.u32 2147483647, %v411
  %vm422 = vcmp.eq.f32.partialorder %v421, 8.507059e+37
  %v423 = vand.u32 %v411, 2147483648
  %v424 = vor.u32 1.1754944e-38, %v423
  %v425 = vsel %vm422, %v424, %v420
  %v426 = vmul.f32 1.0, %v425
  %v427 = vtanh.pop %v407
  %v428 = vmul.f32 %v426, %v374
  %430 = vrot.lane.b32.xlu0 %v427, 64
  %v431 = vpop.permute.xlu0 %430
  %v433 = vmul.f32 %v426, %v431
  %435 = vrot.lane.b32.xlu0 %v433, 32
  %v436 = vpop.permute.xlu0 %435
  %v438 = vadd.f32 %v428, %v436
  %v439 = vtanh.pop %v438
  %441 = vrot.lane.b32.xlu0 %v439, 64
  %v442 = vpop.permute.xlu0 %441
  %v444 = vmul.f32 %v426, %v442
  %v445 = vld [vmem:[#allocation2 + $0x18] sm:$0xff]
  %447 = vrot.lane.b32.xlu0 %v444, 32
  %v448 = vpop.permute.xlu0 %447
  %v449 = vsel %vm255, %v448, 0
  %451 = vmatpush.msra.mxu0 0.0
  %452 = vmatpush.msra.mxu0 0.0
  %453 = vmatpush.msra.mxu0 0.0
  %454 = vmatpush.msra.mxu0 0.0
  %455 = vmatpush.msra.mxu0 0.0
  %456 = vmatpush.msra.mxu0 0.0
  %457 = vmatpush.msra.mxu0 0.0
  %458 = vmatpush.msra.mxu0 0.0
  %459 = vmatpush.msra.mxu0 0.0
  %460 = vmatpush.msra.mxu0 0.0
  %461 = vmatpush.msra.mxu0 0.0
  %462 = vmatpush.msra.mxu0 0.0
  %463 = vmatpush.msra.mxu0 %v253
  %464 = vmatpush.msra.mxu0 %v252
  %465 = vmatpush.msra.mxu0 %v251
  %466 = vmatpush.msra.mxu0 %v250
  %467 = vmatmul.f32.gmra.mxu0 %v449
  %v468 = vpop.f32.mrf.mxu0
  %v469 = vadd.f32 0.0, %v468
  %470 = vdwg.mxu0
  %v471 = vadd.f32 %v445, %v469
  %v472 = vxor.u32 %v471, 2147483648
  %v473 = vmul.f32 %v472, 1.442695
  %v474 = vpow.pop %v473
  %v475 = vadd.f32 %v474, 1.0
  %v476 = vrcp.pop %v475
  %v477 = vmul.f32 %v475, %v476
  %v478 = vsub.f32 1.0, %v477
  %v479 = vmul.f32 %v476, %v478
  %v480 = vadd.f32 %v476, %v479
  %vm481 = vweird.f32 %v475
  %vm482 = vweird.f32 %v476
  %vm483 = vmor %vm481, %vm482
  %v484 = vsel %vm483, %v476, %v480
  %v485 = vand.u32 2147483647, %v475
  %vm486 = vcmp.eq.f32.partialorder %v485, 8.507059e+37
  %v487 = vand.u32 %v475, 2147483648
  %v488 = vor.u32 1.1754944e-38, %v487
  %v489 = vsel %vm486, %v488, %v484
  %v490 = vmul.f32 1.0, %v489
  %v491 = vtanh.pop %v471
  %v492 = vmul.f32 %v490, %v438
  %494 = vrot.lane.b32.xlu0 %v491, 64
  %v495 = vpop.permute.xlu0 %494
  %v497 = vmul.f32 %v490, %v495
  %499 = vrot.lane.b32.xlu0 %v497, 32
  %v500 = vpop.permute.xlu0 %499
  %v502 = vadd.f32 %v492, %v500
  %v503 = vtanh.pop %v502
  %505 = vrot.lane.b32.xlu0 %v503, 64
  %v506 = vpop.permute.xlu0 %505
  %v508 = vmul.f32 %v490, %v506
  %v509 = vld [vmem:[#allocation2 + $0x20] sm:$0xff]
  %511 = vrot.lane.b32.xlu0 %v508, 32
  %v512 = vpop.permute.xlu0 %511
  %v513 = vsel %vm255, %v512, 0
  %515 = vmatpush.msra.mxu0 0.0
  %516 = vmatpush.msra.mxu0 0.0
  %517 = vmatpush.msra.mxu0 0.0
  %518 = vmatpush.msra.mxu0 0.0
  %519 = vmatpush.msra.mxu0 0.0
  %520 = vmatpush.msra.mxu0 0.0
  %521 = vmatpush.msra.mxu0 0.0
  %522 = vmatpush.msra.mxu0 0.0
  %523 = vmatpush.msra.mxu0 0.0
  %524 = vmatpush.msra.mxu0 0.0
  %525 = vmatpush.msra.mxu0 0.0
  %526 = vmatpush.msra.mxu0 0.0
  %527 = vmatpush.msra.mxu0 %v253
  %528 = vmatpush.msra.mxu0 %v252
  %529 = vmatpush.msra.mxu0 %v251
  %530 = vmatpush.msra.mxu0 %v250
  %531 = vmatmul.f32.gmra.mxu0 %v513
  %v532 = vpop.f32.mrf.mxu0
  %v533 = vadd.f32 0.0, %v532
  %534 = vdwg.mxu0
  %v535 = vadd.f32 %v509, %v533
  %v536 = vxor.u32 %v535, 2147483648
  %v537 = vmul.f32 %v536, 1.442695
  %v538 = vpow.pop %v537
  %v539 = vadd.f32 %v538, 1.0
  %v540 = vrcp.pop %v539
  %v541 = vmul.f32 %v539, %v540
  %v542 = vsub.f32 1.0, %v541
  %v543 = vmul.f32 %v540, %v542
  %v544 = vadd.f32 %v540, %v543
  %vm545 = vweird.f32 %v539
  %vm546 = vweird.f32 %v540
  %vm547 = vmor %vm545, %vm546
  %v548 = vsel %vm547, %v540, %v544
  %v549 = vand.u32 2147483647, %v539
  %vm550 = vcmp.eq.f32.partialorder %v549, 8.507059e+37
  %v551 = vand.u32 %v539, 2147483648
  %v552 = vor.u32 1.1754944e-38, %v551
  %v553 = vsel %vm550, %v552, %v548
  %v554 = vmul.f32 1.0, %v553
  %v555 = vtanh.pop %v535
  %v556 = vmul.f32 %v554, %v502
  %558 = vrot.lane.b32.xlu0 %v555, 64
  %v559 = vpop.permute.xlu0 %558
  %v561 = vmul.f32 %v554, %v559
  %563 = vrot.lane.b32.xlu0 %v561, 32
  %v564 = vpop.permute.xlu0 %563
  %v566 = vadd.f32 %v556, %v564
  %v567 = vtanh.pop %v566
  %569 = vrot.lane.b32.xlu0 %v567, 64
  %v570 = vpop.permute.xlu0 %569
  %v572 = vmul.f32 %v554, %v570
  %v573 = vld [vmem:[#allocation2 + $0x28] sm:$0xff]
  %575 = vrot.lane.b32.xlu0 %v572, 32
  %v576 = vpop.permute.xlu0 %575
  %v577 = vsel %vm255, %v576, 0
  %579 = vmatpush.msra.mxu0 0.0
  %580 = vmatpush.msra.mxu0 0.0
  %581 = vmatpush.msra.mxu0 0.0
  %582 = vmatpush.msra.mxu0 0.0
  %583 = vmatpush.msra.mxu0 0.0
  %584 = vmatpush.msra.mxu0 0.0
  %585 = vmatpush.msra.mxu0 0.0
  %586 = vmatpush.msra.mxu0 0.0
  %587 = vmatpush.msra.mxu0 0.0
  %588 = vmatpush.msra.mxu0 0.0
  %589 = vmatpush.msra.mxu0 0.0
  %590 = vmatpush.msra.mxu0 0.0
  %591 = vmatpush.msra.mxu0 %v253
  %592 = vmatpush.msra.mxu0 %v252
  %593 = vmatpush.msra.mxu0 %v251
  %594 = vmatpush.msra.mxu0 %v250
  %595 = vmatmul.f32.gmra.mxu0 %v577
  %v596 = vpop.f32.mrf.mxu0
  %v597 = vadd.f32 0.0, %v596
  %598 = vdwg.mxu0
  %v599 = vadd.f32 %v573, %v597
  %v600 = vxor.u32 %v599, 2147483648
  %v601 = vmul.f32 %v600, 1.442695
  %v602 = vpow.pop %v601
  %v603 = vadd.f32 %v602, 1.0
  %v604 = vrcp.pop %v603
  %v605 = vmul.f32 %v603, %v604
  %v606 = vsub.f32 1.0, %v605
  %v607 = vmul.f32 %v604, %v606
  %v608 = vadd.f32 %v604, %v607
  %vm609 = vweird.f32 %v603
  %vm610 = vweird.f32 %v604
  %vm611 = vmor %vm609, %vm610
  %v612 = vsel %vm611, %v604, %v608
  %v613 = vand.u32 2147483647, %v603
  %vm614 = vcmp.eq.f32.partialorder %v613, 8.507059e+37
  %v615 = vand.u32 %v603, 2147483648
  %v616 = vor.u32 1.1754944e-38, %v615
  %v617 = vsel %vm614, %v616, %v612
  %v618 = vmul.f32 1.0, %v617
  %v619 = vtanh.pop %v599
  %v620 = vmul.f32 %v618, %v566
  %622 = vrot.lane.b32.xlu0 %v619, 64
  %v623 = vpop.permute.xlu0 %622
  %v625 = vmul.f32 %v618, %v623
  %627 = vrot.lane.b32.xlu0 %v625, 32
  %v628 = vpop.permute.xlu0 %627
  %v630 = vadd.f32 %v620, %v628
  %v631 = vtanh.pop %v630
  %633 = vrot.lane.b32.xlu0 %v631, 64
  %v634 = vpop.permute.xlu0 %633
  %v636 = vmul.f32 %v618, %v634
  %v637 = vld [vmem:[#allocation2 + $0x30] sm:$0xff]
  %639 = vrot.lane.b32.xlu0 %v636, 32
  %v640 = vpop.permute.xlu0 %639
  %v641 = vsel %vm255, %v640, 0
  %643 = vmatpush.msra.mxu0 0.0
  %644 = vmatpush.msra.mxu0 0.0
  %645 = vmatpush.msra.mxu0 0.0
  %646 = vmatpush.msra.mxu0 0.0
  %647 = vmatpush.msra.mxu0 0.0
  %648 = vmatpush.msra.mxu0 0.0
  %649 = vmatpush.msra.mxu0 0.0
  %650 = vmatpush.msra.mxu0 0.0
  %651 = vmatpush.msra.mxu0 0.0
  %652 = vmatpush.msra.mxu0 0.0
  %653 = vmatpush.msra.mxu0 0.0
  %654 = vmatpush.msra.mxu0 0.0
  %655 = vmatpush.msra.mxu0 %v253
  %656 = vmatpush.msra.mxu0 %v252
  %657 = vmatpush.msra.mxu0 %v251
  %658 = vmatpush.msra.mxu0 %v250
  %659 = vmatmul.f32.gmra.mxu0 %v641
  %v660 = vpop.f32.mrf.mxu0
  %v661 = vadd.f32 0.0, %v660
  %662 = vdwg.mxu0
  %v663 = vadd.f32 %v637, %v661
  %v664 = vxor.u32 %v663, 2147483648
  %v665 = vmul.f32 %v664, 1.442695
  %v666 = vpow.pop %v665
  %v667 = vadd.f32 %v666, 1.0
  %v668 = vrcp.pop %v667
  %v669 = vmul.f32 %v667, %v668
  %v670 = vsub.f32 1.0, %v669
  %v671 = vmul.f32 %v668, %v670
  %v672 = vadd.f32 %v668, %v671
  %vm673 = vweird.f32 %v667
  %vm674 = vweird.f32 %v668
  %vm675 = vmor %vm673, %vm674
  %v676 = vsel %vm675, %v668, %v672
  %v677 = vand.u32 2147483647, %v667
  %vm678 = vcmp.eq.f32.partialorder %v677, 8.507059e+37
  %v679 = vand.u32 %v667, 2147483648
  %v680 = vor.u32 1.1754944e-38, %v679
  %v681 = vsel %vm678, %v680, %v676
  %v682 = vmul.f32 1.0, %v681
  %v683 = vtanh.pop %v663
  %v684 = vmul.f32 %v682, %v630
  %686 = vrot.lane.b32.xlu0 %v683, 64
  %v687 = vpop.permute.xlu0 %686
  %v689 = vmul.f32 %v682, %v687
  %691 = vrot.lane.b32.xlu0 %v689, 32
  %v692 = vpop.permute.xlu0 %691
  %v694 = vadd.f32 %v684, %v692
  %v695 = vtanh.pop %v694
  %697 = vrot.lane.b32.xlu0 %v695, 64
  %v698 = vpop.permute.xlu0 %697
  %v700 = vmul.f32 %v682, %v698
  %v701 = vld [vmem:[#allocation2 + $0x38] sm:$0xff]
  %703 = vrot.lane.b32.xlu0 %v700, 32
  %v704 = vpop.permute.xlu0 %703
  %v705 = vsel %vm255, %v704, 0
  %707 = vmatpush.msra.mxu0 0.0
  %708 = vmatpush.msra.mxu0 0.0
  %709 = vmatpush.msra.mxu0 0.0
  %710 = vmatpush.msra.mxu0 0.0
  %711 = vmatpush.msra.mxu0 0.0
  %712 = vmatpush.msra.mxu0 0.0
  %713 = vmatpush.msra.mxu0 0.0
  %714 = vmatpush.msra.mxu0 0.0
  %715 = vmatpush.msra.mxu0 0.0
  %716 = vmatpush.msra.mxu0 0.0
  %717 = vmatpush.msra.mxu0 0.0
  %718 = vmatpush.msra.mxu0 0.0
  %719 = vmatpush.msra.mxu0 %v253
  %720 = vmatpush.msra.mxu0 %v252
  %721 = vmatpush.msra.mxu0 %v251
  %722 = vmatpush.msra.mxu0 %v250
  %723 = vmatmul.f32.gmra.mxu0 %v705
  %v724 = vpop.f32.mrf.mxu0
  %v725 = vadd.f32 0.0, %v724
  %726 = vdwg.mxu0
  %v727 = vadd.f32 %v701, %v725
  %v728 = vxor.u32 %v727, 2147483648
  %v729 = vmul.f32 %v728, 1.442695
  %v730 = vpow.pop %v729
  %v731 = vadd.f32 %v730, 1.0
  %v732 = vrcp.pop %v731
  %v733 = vmul.f32 %v731, %v732
  %v734 = vsub.f32 1.0, %v733
  %v735 = vmul.f32 %v732, %v734
  %v736 = vadd.f32 %v732, %v735
  %vm737 = vweird.f32 %v731
  %vm738 = vweird.f32 %v732
  %vm739 = vmor %vm737, %vm738
  %v740 = vsel %vm739, %v732, %v736
  %v741 = vand.u32 2147483647, %v731
  %vm742 = vcmp.eq.f32.partialorder %v741, 8.507059e+37
  %v743 = vand.u32 %v731, 2147483648
  %v744 = vor.u32 1.1754944e-38, %v743
  %v745 = vsel %vm742, %v744, %v740
  %v746 = vmul.f32 1.0, %v745
  %v747 = vtanh.pop %v727
  %v748 = vmul.f32 %v746, %v694
  %750 = vrot.lane.b32.xlu0 %v747, 64
  %v751 = vpop.permute.xlu0 %750
  %v753 = vmul.f32 %v746, %v751
  %755 = vrot.lane.b32.xlu0 %v753, 32
  %v756 = vpop.permute.xlu0 %755
  %v758 = vadd.f32 %v748, %v756
  %v759 = vtanh.pop %v758
  %761 = vrot.lane.b32.xlu0 %v759, 64
  %v762 = vpop.permute.xlu0 %761
  %v764 = vmul.f32 %v746, %v762
  %v765 = vld [vmem:[%s1 + $0x1a8] sm:$0xff]
  %v766 = vld [vmem:[%s1 + $0x1b0] sm:$0xff]
  %v767 = vld [vmem:[%s1 + $0x1b8] sm:$0xff]
  %v768 = vld [vmem:[%s1 + $0x1c0] sm:$0xff]
  %v769 = vld [vmem:[%s1 + $0x5] sm:$0x1]
  %v770 = vperm.slane %v769, 0
  %772 = vrot.lane.b32.xlu0 %v764, 32
  %v773 = vpop.permute.xlu0 %772
  %v774 = vsel %vm255, %v773, 0
  %776 = vmatpush.msra.mxu0 0.0
  %777 = vmatpush.msra.mxu0 0.0
  %778 = vmatpush.msra.mxu0 0.0
  %779 = vmatpush.msra.mxu0 0.0
  %780 = vmatpush.msra.mxu0 0.0
  %781 = vmatpush.msra.mxu0 0.0
  %782 = vmatpush.msra.mxu0 0.0
  %783 = vmatpush.msra.mxu0 0.0
  %784 = vmatpush.msra.mxu0 0.0
  %785 = vmatpush.msra.mxu0 0.0
  %786 = vmatpush.msra.mxu0 0.0
  %787 = vmatpush.msra.mxu0 0.0
  %788 = vmatpush.msra.mxu0 %v768
  %789 = vmatpush.msra.mxu0 %v767
  %790 = vmatpush.msra.mxu0 %v766
  %791 = vmatpush.msra.mxu0 %v765
  %792 = vmatmul.f32.gmra.mxu0 %v774
  %v793 = vpop.f32.mrf.mxu0
  %v794 = vadd.f32 %v770, %v793
  %795 = vdwg.mxu0
  %796 = vst [vmem:[%s2] sm:$0xff] %v794
  // Predicated region
  $region10: #{deepset_rnn_forward.1} parent=0 // pred_check
    _
  $region11: #{deepset_rnn_forward.1} parent=0 // pred_check_branch
    %798 = sbr.rel (0) target = $region13
  $region12: #{deepset_rnn_forward.1} parent=0 // pred_region
    _
  $region13: #{deepset_rnn_forward.1} parent=0 // pred_fallthru
    _
  // Predicated region
  $region14: #{deepset_rnn_forward.1} parent=0 // pred_check
    _
  $region15: #{deepset_rnn_forward.1} parent=0 // pred_check_branch
    %800 = sbr.rel (0) target = $region17
  $region16: #{deepset_rnn_forward.1} parent=0 // pred_region
    _
  $region17: #{deepset_rnn_forward.1} parent=0 // pred_fallthru
    _

</llo_original>
